<compile_context>
chip_gen: v6e
topology: v6e:2x2x1
jax: 0.10.0
libtpu: 0.0.40
codegen_flags: <defaults>
</compile_context>

<pallas_src>
import jax
import jax.numpy as jnp
from jax.experimental import pallas as pl
from jax.experimental.pallas import tpu as pltpu


# Block-size targets (bytes). Kept small enough that Pallas' double-buffered
# input + output blocks (~4x block bytes resident) stay inside every
# generation's scoped-VMEM default (16 MiB v5e, 32 MiB v6e/v7x, 64 MiB physical
# on v7x).
_LANE_CAP_BYTES = 256 * 1024       # cap on the lane-dense last block dim
_BLOCK_CAP_BYTES = 2 * 1024 * 1024  # per-block target


def _prod(xs):
    out = 1
    for s in xs:
        out *= int(s)
    return out


def _pick_lane_dim(t, itemsize):
    """Largest multiple-of-128 divisor of t (capped); t itself if not 128-divisible."""
    if t % 128 != 0:
        # TODO(synk): a non-multiple-of-128 trailing size cannot be made
        # lane-dense without a relayout; accept masked lanes.
        return t
    cap = max(128, _LANE_CAP_BYTES // itemsize)
    best = 128
    c = 128
    limit = min(t, cap)
    while c <= limit:
        if t % c == 0:
            best = c
        c += 128
    return best


# --------------------------- major-dim swap path ------------------------------
def _major_swap(x, d1, d2):
    """x.transpose(d1, d2) with d1 < d2 <= ndim-2 (lane dim untouched).

    Canonicalize to 6-D (P, A, M, B, R, C) with the flattened trailing axis
    factored as R*C (C lane-dense). The swapped dims A, B stay strictly major
    in BOTH layouts, so each grid step is a rectangular copy and the transpose
    is expressed purely by the output index_map.
    """
    shape = x.shape
    itemsize = x.dtype.itemsize

    p = _prod(shape[:d1])
    a = int(shape[d1])
    m = _prod(shape[d1 + 1:d2])
    b = int(shape[d2])
    t = _prod(shape[d2 + 1:])          # >= 1 trailing dim exists (d2 <= nd-2)

    c = _pick_lane_dim(t, itemsize)    # lane-dense last dim (e.g. 16*16 -> 256)
    r = t // c

    # Second-minor block extent: full r if it fits the block budget, else a
    # multiple of 8 (sublane-aligned).
    if r * c * itemsize <= _BLOCK_CAP_BYTES:
        r_blk = r
    else:
        r_blk = max(8, (_BLOCK_CAP_BYTES // (c * itemsize)) // 8 * 8)

    # Fold (part of) the swapped `b` axis into the block so per-step transfers
    # are not overhead-dominated (~0.35 us/step) when per-(a, b) slabs are tiny.
    cell = r_blk * c * itemsize
    b_blk = max(1, min(b, _BLOCK_CAP_BYTES // cell))

    in_canon = x.reshape(p, a, m, b, r, c)          # free row-major relabel
    out_canon_shape = (p, b, m, a, r, c)

    grid = (p, a, m, pl.cdiv(b, b_blk), pl.cdiv(r, r_blk))

    in_spec = pl.BlockSpec(
        (1, 1, 1, b_blk, r_blk, c),
        lambda pi, ai, mi, bi, ri: (pi, ai, mi, bi, ri, 0))
    # The transpose: output block index swaps the roles of `ai` and `bi`.
    out_spec = pl.BlockSpec(
        (1, b_blk, 1, 1, r_blk, c),
        lambda pi, ai, mi, bi, ri: (pi, bi, mi, ai, ri, 0))

    def kernel(x_ref, o_ref):
        # Identical element order; only size-1 major axes move, so this is a
        # layout-preserving relabel (no XLU transpose, no relayout).
        o_ref[...] = x_ref[...].reshape(o_ref.shape)

    out = pl.pallas_call(
        kernel,
        out_shape=jax.ShapeDtypeStruct(out_canon_shape, x.dtype),
        grid=grid,
        in_specs=[in_spec],
        out_specs=out_spec,
        compiler_params=pltpu.CompilerParams(
            dimension_semantics=("parallel",) * len(grid),
            vmem_limit_bytes=32 * 1024 * 1024),
    )(in_canon)

    final = list(shape)
    final[d1], final[d2] = final[d2], final[d1]
    return out.reshape(tuple(final))


# --------------------------- minor-dim swap path ------------------------------
def _minor_swap(x):
    """Swap the last two (sublane/lane) dims: batched transpose, gridded over leading dims."""
    shape = x.shape
    itemsize = x.dtype.itemsize
    lead = _prod(shape[:-2])
    r, c = int(shape[-2]), int(shape[-1])

    per = r * c * itemsize
    lb = max(1, min(lead, _BLOCK_CAP_BYTES // per))
    # TODO(synk): if a single (r, c) slice exceeds the VMEM budget, the last
    # two dims would additionally need tiling with swapped i/j index maps.

    x3 = x.reshape(lead, r, c)                       # free row-major relabel

    def kernel(x_ref, o_ref):
        o_ref[...] = jnp.swapaxes(x_ref[...], 1, 2)  # one batched XLU transpose

    out = pl.pallas_call(
        kernel,
        out_shape=jax.ShapeDtypeStruct((lead, c, r), x.dtype),
        grid=(pl.cdiv(lead, lb),),
        in_specs=[pl.BlockSpec((lb, r, c), lambda i: (i, 0, 0))],
        out_specs=pl.BlockSpec((lb, c, r), lambda i: (i, 0, 0)),
        compiler_params=pltpu.CompilerParams(
            dimension_semantics=("parallel",),
            vmem_limit_bytes=32 * 1024 * 1024),
    )(x3)
    return out.reshape(shape[:-2] + (c, r))


# --------------------------------- wrapper ------------------------------------
def pallas_transpose(x, dim1=0, dim2=1):
    """Pallas TPU equivalent of PyTorch `x.transpose(dim1, dim2)`."""
    nd = x.ndim
    if nd == 0:
        return x
    d1, d2 = sorted((dim1 % nd, dim2 % nd))
    if d1 == d2:
        return x
    if d2 <= nd - 2:
        return _major_swap(x, d1, d2)       # module default (0, 1) lands here
    if d1 == nd - 2:                        # swapping the last two dims
        return _minor_swap(x)
    # TODO(synk): swaps mixing a leading dim with the lane (last) dim need a
    # relayout/gather kernel; fall back to XLA for correctness.
    return jnp.swapaxes(x, d1, d2)


class Transpose:
    """Drop-in analogue of the PyTorch nn.Module."""

    def __init__(self, dim1=0, dim2=1):
        self.dim1 = dim1
        self.dim2 = dim2

    def __call__(self, x):
        return pallas_transpose(x, self.dim1, self.dim2)


# ----------------------------------- main --------------------------------------
if __name__ == "__main__":
    key = jax.random.PRNGKey(0)

    # Module default: swap dims 0 and 1 of a 4-D input (major-dim swap path).
    x = jax.random.normal(key, (2, 4, 16, 16), dtype=jnp.float32)
    y = jax.block_until_ready(Transpose()(x))
    ref = jnp.swapaxes(x, 0, 1)
    assert y.shape == (4, 2, 16, 16), y.shape
    assert bool(jnp.array_equal(y, ref)), "major-swap mismatch vs jnp.swapaxes"

    # Minor-dim swap path (last two dims), lane-dense tile.
    x2 = jax.random.normal(key, (2, 3, 8, 128), dtype=jnp.float32)
    y2 = jax.block_until_ready(Transpose(2, 3)(x2))
    assert bool(jnp.array_equal(y2, jnp.swapaxes(x2, 2, 3))), "minor-swap mismatch"

    # Mixed (leading <-> lane) swap: documented jnp fallback, still correct.
    y3 = jax.block_until_ready(Transpose(0, 3)(x))
    assert bool(jnp.array_equal(y3, jnp.swapaxes(x, 0, 3))), "mixed-swap mismatch"

    print("KERNEL_OK")
</pallas_src>

<mosaic_0001>
module attributes {stable_mosaic.version = 11 : i64} {
  func.func @kernel(%arg0: i32, %arg1: i32, %arg2: i32, %arg3: i32, %arg4: i32, %arg5: memref<1x1x1x4x1x256xf32, #tpu.memory_space<vmem>>, %arg6: memref<1x4x1x1x1x256xf32, #tpu.memory_space<vmem>>) attributes {dimension_semantics = [#tpu.dimension_semantics<parallel>, #tpu.dimension_semantics<parallel>, #tpu.dimension_semantics<parallel>, #tpu.dimension_semantics<parallel>, #tpu.dimension_semantics<parallel>], iteration_bounds = array<i64: 1, 2, 1, 1, 1>, scalar_prefetch = 0 : i64, scratch_operands = 0 : i64, tpu.core_type = #tpu.core_type<tc>, window_params = [{transform_indices = @transform_0, window_bounds = array<i64: 1, 1, 1, 4, 1, 256>}, {transform_indices = @transform_1, window_bounds = array<i64: 1, 4, 1, 1, 1, 256>}]} {
    %c0 = arith.constant 0 : index
    %c0_0 = arith.constant 0 : index
    %c0_1 = arith.constant 0 : index
    %c0_2 = arith.constant 0 : index
    %c0_3 = arith.constant 0 : index
    %c0_4 = arith.constant 0 : index
    %0 = vector.load %arg5[%c0, %c0_0, %c0_1, %c0_2, %c0_3, %c0_4] : memref<1x1x1x4x1x256xf32, #tpu.memory_space<vmem>>, vector<1x1x1x4x1x256xf32>
    %1 = vector.shape_cast %0 : vector<1x1x1x4x1x256xf32> to vector<1x4x1x1x1x256xf32>
    %c0_5 = arith.constant 0 : index
    %c0_6 = arith.constant 0 : index
    %c0_7 = arith.constant 0 : index
    %c0_8 = arith.constant 0 : index
    %c0_9 = arith.constant 0 : index
    %c0_10 = arith.constant 0 : index
    %2 = vector.load %arg6[%c0_5, %c0_6, %c0_7, %c0_8, %c0_9, %c0_10] : memref<1x4x1x1x1x256xf32, #tpu.memory_space<vmem>>, vector<1x4x1x1x1x256xf32>
    tpu.vector_store %arg6[%c0_5, %c0_6, %c0_7, %c0_8, %c0_9, %c0_10], %1 {strides = array<i32>} : memref<1x4x1x1x1x256xf32, #tpu.memory_space<vmem>>, vector<1x4x1x1x1x256xf32>,
    return
  }
  func.func @transform_0(%arg0: i32, %arg1: i32, %arg2: i32, %arg3: i32, %arg4: i32) -> (i32, i32, i32, i32, i32, i32) {
    %c0_i32 = arith.constant 0 : i32
    %c0_i32_0 = arith.constant 0 : i32
    return %arg0, %arg1, %arg2, %arg3, %arg4, %c0_i32 : i32, i32, i32, i32, i32, i32
  }
  func.func @transform_1(%arg0: i32, %arg1: i32, %arg2: i32, %arg3: i32, %arg4: i32) -> (i32, i32, i32, i32, i32, i32) {
    %c0_i32 = arith.constant 0 : i32
    %c0_i32_0 = arith.constant 0 : i32
    return %arg0, %arg3, %arg2, %arg1, %arg4, %c0_i32 : i32, i32, i32, i32, i32, i32
  }
}

</mosaic_0001>

<llo_original>
// kernel: tpu_custom_call.1
$region0: #{tpu_custom_call.1}
  #allocation0 [shape = 'u32[]', space=smem, size = 0x4, offset = 0x4, fixed_abs, tag = 'smem constant byte address 0x4 - core index']
  #allocation1 [shape = 'u32[144,128]{1,0:T(1,128)}', space=vmem, size = 0x12000, scoped, tag = 'internal scratch']
  %s0 = inlined_call_operand.hbm [shape: f32[1,2,1,4,1,256], index: 0, kind: input, shape index: {}]
  %s1 = inlined_call_operand.hbm [shape: f32[1,4,1,2,1,256], index: 1, kind: output, shape index: {}]
  %s2 = sld [smem:[#allocation0]]
  $region41: #{tpu_custom_call.1} parent=0
    _
  %s4 = ssub.s32 1, %s2
  %s5 = scalar_select 0, %s4, %s2
  $region1: #{tpu_custom_call.1} parent=0
    #allocation2 [shape = 'u8[8192]{0}', space=vmem, size = 0x2000, scoped, tag = 'input window, operand 0']
    #allocation3 [shape = 's32[2]{0}', space=sflag, size = 0x8, scoped, tag = 'scoped memory for tpu_custom_call.1']
    #allocation4 [shape = 's32[2]{0}', space=sflag, size = 0x8, scoped, tag = 'scoped memory for tpu_custom_call.1']
    #allocation5 [shape = 'u8[8192]{0}', space=vmem, size = 0x2000, scoped, tag = 'output window, operand 0']
    %6 = vsyncpa [#allocation3], 0
    %s7 = scalar_lea.sflag [#allocation3], 1
    %8 = vsyncpa %s7, 0
    %9 = vsyncpa [#allocation4], 0
    %s10 = scalar_lea.sflag [#allocation4], 1
    %11 = vsyncpa %s10, 0
    loop: start=0, step=1, limit=4
    $region2: #{tpu_custom_call.1} parent=1 // loop_pre_header
      _
    $region3: #{tpu_custom_call.1} parent=1 // loop_header
      %s13 = sphi 0, %s17
      %p14 = scmp.ge.s32.totalorder %s13, 4
      %s20 = sphi 0, %s53
      %s21 = sphi 0, %s49
      %s22 = sphi 0, %s45
      %s23 = sphi 0, %s41
      %s24 = sphi 0, %s37
      %s25 = sphi 0, %s20
      %s26 = sphi 0, %s21
      %s27 = sphi 0, %s22
      %s28 = sphi 0, %s23
      %s29 = sphi 0, %s24
      %s30 = sphi 0, %s25
      %s31 = sphi 0, %s26
      %s32 = sphi 0, %s27
      %s33 = sphi 0, %s28
      %s34 = sphi 0, %s29
      %s64 = sphi 0, %s66
      %s67 = sphi 0, %s64
      %s68 = sphi 0, %s67
      %s84 = sphi 0, %s68
      %s98 = sphi 0, %s100
      %s101 = sphi 0, %s98
      %s102 = sphi 0, %s101
      %s118 = sphi 0, %s102
    $region4: #{tpu_custom_call.1} parent=1 // loop_header_branch
      %16 = sbr.rel (%p14) target = $region8
    $region5: #{tpu_custom_call.1} parent=1 // loop_body
      %s18 = ssub.s32 %s13, 1
      %s19 = ssub.s32 %s13, 2
      %s35 = sadd.s32 1, %s24
      %p36 = scmp.ge.s32.totalorder %s35, 1
      %s37 = scalar_select %p36, 0, %s35
      %s38 = sadd.s32 1, %s23
      %s39 = scalar_select %p36, %s38, %s23
      %p40 = scmp.ge.s32.totalorder %s39, 1
      %s41 = scalar_select %p40, 0, %s39
      %s42 = sadd.s32 1, %s22
      %s43 = scalar_select %p40, %s42, %s22
      %p44 = scmp.ge.s32.totalorder %s43, 1
      %s45 = scalar_select %p44, 0, %s43
      %s46 = sadd.s32 1, %s21
      %s47 = scalar_select %p44, %s46, %s21
      %p48 = scmp.ge.s32.totalorder %s47, 2
      %s49 = scalar_select %p48, 0, %s47
      %s50 = sadd.s32 1, %s20
      %s51 = scalar_select %p48, %s50, %s20
      %p52 = scmp.ge.s32.totalorder %s51, 1
      %s53 = scalar_select %p52, 0, %s51
      %s54 = ssub.s32 %s20, %s53
      %s55 = ssub.s32 %s21, %s49
      %s56 = sor.u32 %s54, %s55
      %s57 = ssub.s32 %s22, %s45
      %s58 = sor.u32 %s56, %s57
      %s59 = ssub.s32 %s23, %s41
      %s60 = sor.u32 %s58, %s59
      %s61 = ssub.s32 %s24, %s37
      %s62 = sor.u32 %s60, %s61
      %p63 = scmp.eq.s32.totalorder %s62, 0
      %s65 = sadd.s32 %s64, 1
      %s66 = scalar_select %p63, %s64, %s65
      %p69 = pneg %p63
      %p70 = scmp.eq.s32.totalorder %s13, 1
      %p71 = por %p69, %p70
      %p72 = scmp.ne.s32.totalorder %s64, %s67
      %p73 = scmp.eq.s32.totalorder %s13, 0
      %p74 = por %p72, %p73
      %p75 = scmp.ne.s32.totalorder %s64, %s67
      %p76 = scmp.eq.s32.totalorder %s18, 1
      %p77 = por %p75, %p76
      %p78 = scmp.ne.s32.totalorder %s67, %s68
      %p79 = scmp.eq.s32.totalorder %s18, 0
      %p80 = por %p78, %p79
      %p81 = scmp.ne.s32.totalorder %s67, %s68
      %p82 = scmp.eq.s32.totalorder %s19, 1
      %p83 = por %p81, %p82
      %p85 = scmp.ne.s32.totalorder %s68, %s84
      %p86 = scmp.eq.s32.totalorder %s19, 0
      %p87 = por %p85, %p86
      %s88 = ssub.s32 %s20, %s53
      %s89 = ssub.s32 %s23, %s41
      %s90 = sor.u32 %s88, %s89
      %s91 = ssub.s32 %s22, %s45
      %s92 = sor.u32 %s90, %s91
      %s93 = ssub.s32 %s21, %s49
      %s94 = sor.u32 %s92, %s93
      %s95 = ssub.s32 %s24, %s37
      %s96 = sor.u32 %s94, %s95
      %p97 = scmp.eq.s32.totalorder %s96, 0
      %s99 = sadd.s32 %s98, 1
      %s100 = scalar_select %p97, %s98, %s99
      %p103 = pneg %p97
      %p104 = scmp.eq.s32.totalorder %s13, 1
      %p105 = por %p103, %p104
      %p106 = scmp.ne.s32.totalorder %s98, %s101
      %p107 = scmp.eq.s32.totalorder %s13, 0
      %p108 = por %p106, %p107
      %p109 = scmp.ne.s32.totalorder %s98, %s101
      %p110 = scmp.eq.s32.totalorder %s18, 1
      %p111 = por %p109, %p110
      %p112 = scmp.ne.s32.totalorder %s101, %s102
      %p113 = scmp.eq.s32.totalorder %s18, 0
      %p114 = por %p112, %p113
      %p115 = scmp.ne.s32.totalorder %s101, %s102
      %p116 = scmp.eq.s32.totalorder %s19, 1
      %p117 = por %p115, %p116
      %p119 = scmp.ne.s32.totalorder %s102, %s118
      %p120 = scmp.eq.s32.totalorder %s19, 0
      %p121 = por %p119, %p120
      %p122 = scmp.le.s32.totalorder 1, %s13
      %p123 = scmp.lt.s32.totalorder %s13, 3
      %p124 = pnand %p122, %p123
      %p125 = pneg %p124
      // Predicated region
      $region9: #{tpu_custom_call.1} parent=5 // pred_check
        _
      $region10: #{tpu_custom_call.1} parent=5 // pred_check_branch
        %127 = sbr.rel (%p124) target = $region12
      $region11: #{tpu_custom_call.1} parent=5 // pred_region
        %s128 = ssub.s32 %s13, 1
      $region12: #{tpu_custom_call.1} parent=5 // pred_fallthru
        _
      %p129 = scmp.lt.s32.totalorder %s13, 2
      // Predicated region
      $region13: #{tpu_custom_call.1} parent=5 // pred_check
        %p130 = pneg %p129
      $region14: #{tpu_custom_call.1} parent=5 // pred_check_branch
        %132 = sbr.rel (%p130) target = $region16
      $region15: #{tpu_custom_call.1} parent=5 // pred_region
        // Predicated region
        $region17: #{tpu_custom_call.1} parent=15 // pred_check
          %p133 = pneg %p74
        $region18: #{tpu_custom_call.1} parent=15 // pred_check_branch
          %135 = sbr.rel (%p133) target = $region20
        $region19: #{tpu_custom_call.1} parent=15 // pred_region
          %s136 = sand.u32 %s64, 1
          %s137 = scalar_lea.sflag [#allocation3], %s136
          %s138 = sand.u32 %s64, 1
          %s139 = smul.addr %s138, 8
          %s140 = scalar_lea.vmem [#allocation2], %s139
          %s141 = smul.u32 4, %s23
          %s143 = ssub.s32 128, 128
          %144 = vsyncadd %s137, %s143
          %s145 = smul.addr %s24, 2
          %s146 = smul.addr %s141, 2
          %s147 = sadd.s32 %s145, %s146
          %s148 = smul.addr %s22, 8
          %s149 = sadd.s32 %s147, %s148
          %s150 = smul.addr %s21, 8
          %s151 = sadd.s32 %s149, %s150
          %s152 = smul.addr %s20, 16
          %s153 = sadd.s32 %s151, %s152
          %s154 = smul.addr %s153, 16
          %s155 = scalar_lea.hbm %s0, %s154
          %s156 = sshll.u32 %s140, 4
          %s157 = int_to_ptr.vmem [resolvable:$true] %s156
          %162 = dma.hbm_to_vmem [thread:$0]  %s155, 128, %s157, %s137, 32, 32, 2
        $region20: #{tpu_custom_call.1} parent=15 // pred_fallthru
          _
      $region16: #{tpu_custom_call.1} parent=5 // pred_fallthru
        _
      %p163 = scmp.le.s32.totalorder 1, %s13
      %p164 = scmp.lt.s32.totalorder %s13, 3
      %p165 = pnand %p163, %p164
      %p166 = pneg %p165
      // Predicated region
      $region21: #{tpu_custom_call.1} parent=5 // pred_check
        _
      $region22: #{tpu_custom_call.1} parent=5 // pred_check_branch
        %168 = sbr.rel (%p165) target = $region24
      $region23: #{tpu_custom_call.1} parent=5 // pred_region
        %s169 = ssub.s32 %s13, 1
        %s170 = sand.u32 %s67, 1
        %s171 = scalar_lea.sflag [#allocation3], %s170
        %s172 = sand.u32 %s67, 1
        %s173 = smul.addr %s172, 8
        %s174 = scalar_lea.vmem [#allocation2], %s173
        // Predicated region
        $region25: #{tpu_custom_call.1} parent=23 // pred_check
          %p175 = pneg %p80
        $region26: #{tpu_custom_call.1} parent=23 // pred_check_branch
          %177 = sbr.rel (%p175) target = $region28
        $region27: #{tpu_custom_call.1} parent=23 // pred_region
          %178 = dma.done %s171, 128
        $region28: #{tpu_custom_call.1} parent=23 // pred_fallthru
          _
        %s179 = sand.u32 %s67, 1
        %s180 = scalar_lea.sflag [#allocation3], %s179
        %s181 = sand.u32 %s67, 1
        %s182 = smul.addr %s181, 8
        %s183 = scalar_lea.vmem [#allocation2], %s182
        %p184 = pneg %p80
        %p185 = pneg %p77
        %p186 = pneg %p114
        %p187 = pneg %p111
        %s188 = sand.u32 %s101, 1
        %s189 = scalar_lea.sflag [#allocation4], %s188
        %s190 = sand.u32 %s101, 1
        %s191 = smul.addr %s190, 8
        %s192 = scalar_lea.vmem [#allocation5], %s191
        %s193 = smul.u32 4, %s28
        %s194 = smul.u32 4, %s28
        %v195 = vld [vmem:[%s174] sm:$0x3]
        %v196 = vld [vmem:[%s174 + $0x2] sm:$0x3]
        %v197 = vld [vmem:[%s174 + $0x4] sm:$0x3]
        %v198 = vld [vmem:[%s174 + $0x6] sm:$0x3]
        %v199 = vlaneseq
        %vm200 = vcmp.ge.s32.totalorder %v199, 0
        %vm201 = vcmp.lt.s32.totalorder %v199, 256
        %vm202 = vmand %vm200, %vm201
        %203 = vst.msk [vmem:[%s192] sm:$0x3] %vm202, %v195
        %204 = vst.msk [vmem:[%s192 + $0x2] sm:$0x3] %vm202, %v196
        %205 = vst.msk [vmem:[%s192 + $0x4] sm:$0x3] %vm202, %v197
        %206 = vst.msk [vmem:[%s192 + $0x6] sm:$0x3] %vm202, %v198
        %s207 = sand.u32 %s101, 1
        %s208 = scalar_lea.sflag [#allocation4], %s207
        %s209 = sand.u32 %s101, 1
        %s210 = smul.addr %s209, 8
        %s211 = scalar_lea.vmem [#allocation5], %s210
        // Predicated region
        $region29: #{tpu_custom_call.1} parent=23 // pred_check
          %p212 = pneg %p111
        $region30: #{tpu_custom_call.1} parent=23 // pred_check_branch
          %214 = sbr.rel (%p212) target = $region32
        $region31: #{tpu_custom_call.1} parent=23 // pred_region
          %s215 = smul.u32 4, %s28
          %s217 = ssub.s32 128, 128
          %218 = vsyncadd %s208, %s217
          %s219 = smul.addr %s29, 2
          %s220 = smul.addr %s26, 2
          %s221 = sadd.s32 %s219, %s220
          %s222 = smul.addr %s27, 4
          %s223 = sadd.s32 %s221, %s222
          %s224 = smul.addr %s215, 4
          %s225 = sadd.s32 %s223, %s224
          %s226 = smul.addr %s25, 16
          %s227 = sadd.s32 %s225, %s226
          %s228 = smul.addr %s227, 16
          %s229 = scalar_lea.hbm %s1, %s228
          %s230 = sshll.u32 %s211, 4
          %s231 = int_to_ptr.vmem [resolvable:$true] %s230
          %236 = dma.vmem_to_hbm [thread:$0]  %s231, 128, %s229, %s208, 32, 64, 2
        $region32: #{tpu_custom_call.1} parent=23 // pred_fallthru
          _
      $region24: #{tpu_custom_call.1} parent=5 // pred_fallthru
        _
      %p237 = scmp.le.s32.totalorder 2, %s13
      // Predicated region
      $region33: #{tpu_custom_call.1} parent=5 // pred_check
        %p238 = pneg %p237
      $region34: #{tpu_custom_call.1} parent=5 // pred_check_branch
        %240 = sbr.rel (%p238) target = $region36
      $region35: #{tpu_custom_call.1} parent=5 // pred_region
        %s241 = ssub.s32 %s13, 2
        // Predicated region
        $region37: #{tpu_custom_call.1} parent=35 // pred_check
          %p242 = pneg %p117
        $region38: #{tpu_custom_call.1} parent=35 // pred_check_branch
          %244 = sbr.rel (%p242) target = $region40
        $region39: #{tpu_custom_call.1} parent=35 // pred_region
          %s245 = sand.u32 %s102, 1
          %s246 = scalar_lea.sflag [#allocation4], %s245
          %s247 = sand.u32 %s102, 1
          %s248 = smul.addr %s247, 8
          %s249 = scalar_lea.vmem [#allocation5], %s248
          %250 = dma.done %s246, 128
        $region40: #{tpu_custom_call.1} parent=35 // pred_fallthru
          _
      $region36: #{tpu_custom_call.1} parent=5 // pred_fallthru
        _
    $region6: #{tpu_custom_call.1} parent=1 // loop_footer
      %s17 = sadd.s32 1, %s13
    $region7: #{tpu_custom_call.1} parent=1 // loop_footer_branch
      %12 = sbr.rel target = $region3
    $region8: #{tpu_custom_call.1} parent=1 // loop_exit
      _
    %251 = vsyncpa [#allocation3], 1
    %s252 = scalar_lea.sflag [#allocation3], 1
    %253 = vsyncpa %s252, 1
    %254 = vsyncpa [#allocation4], 1
    %s255 = scalar_lea.sflag [#allocation4], 1
    %256 = vsyncpa %s255, 1

</llo_original>
